<compile_context>
chip_gen: v7x
topology: tpu7x:2x2x1
jax: 0.10.0
libtpu: 0.0.40
codegen_flags: <defaults>
</compile_context>

<pallas_src>
import jax
import jax.numpy as jnp
from jax.experimental import pallas as pl
from jax.experimental.pallas import tpu as pltpu

HYBER_PARA = 16
DIM_EMBED = HYBER_PARA            # embedding_dim_drug == embedding_dim_target == 16
EMBED_NUM_DRUG = 64
EMBED_NUM_TARGET = 25
DRUG_LEN = 128                    # drug sequence padded/truncated to 128
TARGET_LEN = 512                  # protein sequence padded/truncated to 512


def _classical_pre_kernel(drug_ids_ref, target_ids_ref,
                          drug_tbl_ref, target_tbl_ref, out_ref):
    """drug_ids_ref:   (1, 128) int32 token ids.
    target_ids_ref: (1, 512) int32 token ids.
    drug_tbl_ref:   (64, 16) f32 embedding table (row 0 == padding row == 0).
    target_tbl_ref: (25, 16) f32 embedding table (row 0 == padding row == 0).
    out_ref:        (2, 16, 16) f32 — [0] = drug Gram, [1] = target Gram.
    """

    def gram(ids, table):
        # ids: (1, L) int32, lane-major.  table: (V, D) f32.
        V = table.shape[0]
        L = ids.shape[1]
        # Lane-dense one-hot over (V, L): vocab on sublanes, sequence on lanes.
        vocab_iota = jax.lax.broadcasted_iota(jnp.int32, (V, L), 0)   # (V, L)
        one_hot = (ids == vocab_iota).astype(jnp.float32)             # (V, L) VPU
        counts = jnp.sum(one_hot, axis=1, keepdims=True)              # (V, 1) XLU
        # E.T @ E == (table * counts).T @ table — contract dim 0, no explicit .T.
        scaled = table * counts                                       # (V, D)
        return jax.lax.dot_general(
            scaled, table,
            dimension_numbers=(((0,), (0,)), ((), ())),
            preferred_element_type=jnp.float32)                       # (D, D)

    out_ref[0] = gram(drug_ids_ref[...], drug_tbl_ref[...])
    out_ref[1] = gram(target_ids_ref[...], target_tbl_ref[...])


@jax.jit
def classical_pre_forward(drug_ids, target_ids, embed_drug, embed_target):
    """Mirrors ClassicalPre.forward -> (C_input_d, C_input_t), each (1, 16, 16)."""
    drug_ids_2d = drug_ids.reshape(1, DRUG_LEN).astype(jnp.int32)
    target_ids_2d = target_ids.reshape(1, TARGET_LEN).astype(jnp.int32)

    vmem = pl.BlockSpec(memory_space=pltpu.MemorySpace.VMEM)
    grams = pl.pallas_call(
        _classical_pre_kernel,
        out_shape=jax.ShapeDtypeStruct((2, DIM_EMBED, DIM_EMBED), jnp.float32),
        in_specs=[vmem, vmem, vmem, vmem],
        out_specs=vmem,
    )(drug_ids_2d, target_ids_2d,
      embed_drug.astype(jnp.float32), embed_target.astype(jnp.float32))

    c_input_d = grams[0:1]    # (1, 16, 16)
    c_input_t = grams[1:2]    # (1, 16, 16)
    return c_input_d, c_input_t


def _init_params(key):
    """Deterministic nn.Embedding-style init (N(0,1)), with padding_idx=0 zeroed."""
    k_d, k_t = jax.random.split(key)
    embed_drug = jax.random.normal(k_d, (EMBED_NUM_DRUG, DIM_EMBED), jnp.float32)
    embed_target = jax.random.normal(k_t, (EMBED_NUM_TARGET, DIM_EMBED), jnp.float32)
    embed_drug = embed_drug.at[0].set(0.0)      # padding_idx=0
    embed_target = embed_target.at[0].set(0.0)  # padding_idx=0
    return embed_drug, embed_target


def _reference(drug_ids, target_ids, embed_drug, embed_target):
    d = jnp.take(embed_drug, drug_ids, axis=0)
    t = jnp.take(embed_target, target_ids, axis=0)
    gd = d.T @ d
    gt = t.T @ t
    return (gd.reshape(-1, HYBER_PARA, HYBER_PARA),
            gt.reshape(-1, HYBER_PARA, HYBER_PARA))


if __name__ == "__main__":
    key = jax.random.PRNGKey(0)
    k_params, k_drug, k_target = jax.random.split(key, 3)

    embed_drug, embed_target = _init_params(k_params)

    # Synthetic tokenized inputs mimicking datapre(): a 40-char SMILES and a
    # 300-residue protein, zero-padded to fixed lengths 128 / 512.
    # Ids stay strictly inside the embedding tables (drug: 1..63, target: 1..24).
    drug_valid = jax.random.randint(k_drug, (40,), 1, EMBED_NUM_DRUG, dtype=jnp.int32)
    target_valid = jax.random.randint(k_target, (300,), 1, EMBED_NUM_TARGET,
                                      dtype=jnp.int32)
    drug_ids = jnp.zeros((DRUG_LEN,), jnp.int32).at[:40].set(drug_valid)
    target_ids = jnp.zeros((TARGET_LEN,), jnp.int32).at[:300].set(target_valid)

    c_d, c_t = classical_pre_forward(drug_ids, target_ids, embed_drug, embed_target)
    jax.block_until_ready((c_d, c_t))

    ref_d, ref_t = _reference(drug_ids, target_ids, embed_drug, embed_target)
    assert c_d.shape == (1, HYBER_PARA, HYBER_PARA)
    assert c_t.shape == (1, HYBER_PARA, HYBER_PARA)
    assert jnp.allclose(c_d, ref_d, atol=1e-4, rtol=1e-4)
    assert jnp.allclose(c_t, ref_t, atol=1e-4, rtol=1e-4)

    print("KERNEL_OK")
</pallas_src>

<mosaic_0001>
module attributes {stable_mosaic.version = 11 : i64} {
  func.func @_classical_pre_kernel(%arg0: memref<1x128xi32, #tpu.memory_space<vmem>>, %arg1: memref<1x512xi32, #tpu.memory_space<vmem>>, %arg2: memref<64x16xf32, #tpu.memory_space<vmem>>, %arg3: memref<25x16xf32, #tpu.memory_space<vmem>>, %arg4: memref<2x16x16xf32, #tpu.memory_space<vmem>>) attributes {dimension_semantics = [], scalar_prefetch = 0 : i64, scratch_operands = 0 : i64, tpu.core_type = #tpu.core_type<tc>} {
    %c0 = arith.constant 0 : index
    %c0_0 = arith.constant 0 : index
    %0 = vector.load %arg0[%c0, %c0_0] : memref<1x128xi32, #tpu.memory_space<vmem>>, vector<1x128xi32>
    %c0_1 = arith.constant 0 : index
    %c0_2 = arith.constant 0 : index
    %1 = vector.load %arg2[%c0_1, %c0_2] : memref<64x16xf32, #tpu.memory_space<vmem>>, vector<64x16xf32>
    %2 = tpu.iota {dimensions = array<i32: 0>} : vector<64x128xi32>
    %3 = vector.broadcast %0 : vector<1x128xi32> to vector<64x128xi32>
    %4 = arith.cmpi eq, %3, %2 : vector<64x128xi32>
    %5 = arith.extui %4 : vector<64x128xi1> to vector<64x128xi32>
    %6 = arith.sitofp %5 : vector<64x128xi32> to vector<64x128xf32>
    %cst = arith.constant dense<0.000000e+00> : vector<64xf32>
    %7 = vector.multi_reduction <add>, %6, %cst [1] : vector<64x128xf32> to vector<64xf32>
    %8 = vector.shape_cast %7 : vector<64xf32> to vector<64x1xf32>
    %9 = vector.broadcast %8 : vector<64x1xf32> to vector<64x16xf32>
    %10 = arith.mulf %1, %9 : vector<64x16xf32>
    %cst_3 = arith.constant dense<0.000000e+00> : vector<16x16xf32>
    %11 = tpu.matmul %10, %1, %cst_3 {dimension_numbers = #tpu.dot_dimension_numbers<[0], [0], [1], [1], [0, 1, 1, 1], [], []>} : vector<64x16xf32>, vector<64x16xf32>, vector<16x16xf32> -> vector<16x16xf32>
    %c0_4 = arith.constant 0 : index
    %c0_5 = arith.constant 0 : index
    %c0_6 = arith.constant 0 : index
    %12 = vector.load %arg4[%c0_4, %c0_5, %c0_6] : memref<2x16x16xf32, #tpu.memory_space<vmem>>, vector<1x16x16xf32>
    %13 = vector.shape_cast %12 : vector<1x16x16xf32> to vector<16x16xf32>
    %14 = vector.shape_cast %11 : vector<16x16xf32> to vector<1x16x16xf32>
    tpu.vector_store %arg4[%c0_4, %c0_5, %c0_6], %14 {strides = array<i32>} : memref<2x16x16xf32, #tpu.memory_space<vmem>>, vector<1x16x16xf32>,
    %c0_7 = arith.constant 0 : index
    %c0_8 = arith.constant 0 : index
    %15 = vector.load %arg1[%c0_7, %c0_8] : memref<1x512xi32, #tpu.memory_space<vmem>>, vector<1x512xi32>
    %c0_9 = arith.constant 0 : index
    %c0_10 = arith.constant 0 : index
    %16 = vector.load %arg3[%c0_9, %c0_10] : memref<25x16xf32, #tpu.memory_space<vmem>>, vector<25x16xf32>
    %17 = tpu.iota {dimensions = array<i32: 0>} : vector<25x512xi32>
    %18 = vector.broadcast %15 : vector<1x512xi32> to vector<25x512xi32>
    %19 = arith.cmpi eq, %18, %17 : vector<25x512xi32>
    %20 = arith.extui %19 : vector<25x512xi1> to vector<25x512xi32>
    %21 = arith.sitofp %20 : vector<25x512xi32> to vector<25x512xf32>
    %cst_11 = arith.constant dense<0.000000e+00> : vector<25xf32>
    %22 = vector.multi_reduction <add>, %21, %cst_11 [1] : vector<25x512xf32> to vector<25xf32>
    %23 = vector.shape_cast %22 : vector<25xf32> to vector<25x1xf32>
    %24 = vector.broadcast %23 : vector<25x1xf32> to vector<25x16xf32>
    %25 = arith.mulf %16, %24 : vector<25x16xf32>
    %cst_12 = arith.constant dense<0.000000e+00> : vector<16x16xf32>
    %26 = tpu.matmul %25, %16, %cst_12 {dimension_numbers = #tpu.dot_dimension_numbers<[0], [0], [1], [1], [0, 1, 1, 1], [], []>} : vector<25x16xf32>, vector<25x16xf32>, vector<16x16xf32> -> vector<16x16xf32>
    %c1 = arith.constant 1 : index
    %c0_13 = arith.constant 0 : index
    %c0_14 = arith.constant 0 : index
    %27 = vector.load %arg4[%c1, %c0_13, %c0_14] : memref<2x16x16xf32, #tpu.memory_space<vmem>>, vector<1x16x16xf32>
    %28 = vector.shape_cast %27 : vector<1x16x16xf32> to vector<16x16xf32>
    %29 = vector.shape_cast %26 : vector<16x16xf32> to vector<1x16x16xf32>
    tpu.vector_store %arg4[%c1, %c0_13, %c0_14], %29 {strides = array<i32>} : memref<2x16x16xf32, #tpu.memory_space<vmem>>, vector<1x16x16xf32>,
    return
  }
}

</mosaic_0001>

<llo_original>
// kernel: classical_pre_forward.1
$region0: #{classical_pre_forward.1}
  #allocation0 [shape = 'u32[]', space=smem, size = 0x4, offset = 0x4, fixed_abs, tag = 'smem constant byte address 0x4 - core index']
  #allocation1 [shape = 'u32[144,128]{1,0:T(1,128)}', space=vmem, size = 0x12000, scoped, tag = 'internal scratch']
  %s0 = inlined_call_operand.vmem [shape: s32[1,128], index: 0, kind: input, shape index: {}]
  %s1 = inlined_call_operand.vmem [shape: s32[1,512], index: 1, kind: input, shape index: {}]
  %s2 = inlined_call_operand.vmem [shape: f32[64,16], index: 2, kind: input, shape index: {}]
  %s3 = inlined_call_operand.vmem [shape: f32[25,16], index: 3, kind: input, shape index: {}]
  %s4 = inlined_call_operand.vmem [shape: f32[2,16,16], index: 4, kind: output, shape index: {}]
  %s5 = sld [smem:[#allocation0]]
  $region26: #{classical_pre_forward.1} parent=0
    _
  %s7 = ssub.s32 1, %s5
  %s8 = scalar_select 0, %s7, %s5
  // Predicated region
  $region2: #{classical_pre_forward.1} parent=0 // pred_check
    _
  $region3: #{classical_pre_forward.1} parent=0 // pred_check_branch
    %10 = sbr.rel (0) target = $region5
  $region4: #{classical_pre_forward.1} parent=0 // pred_region
    _
  $region5: #{classical_pre_forward.1} parent=0 // pred_fallthru
    _
  // Predicated region
  $region6: #{classical_pre_forward.1} parent=0 // pred_check
    _
  $region7: #{classical_pre_forward.1} parent=0 // pred_check_branch
    %12 = sbr.rel (0) target = $region9
  $region8: #{classical_pre_forward.1} parent=0 // pred_region
    _
  $region9: #{classical_pre_forward.1} parent=0 // pred_fallthru
    _
  // Predicated region
  $region10: #{classical_pre_forward.1} parent=0 // pred_check
    _
  $region11: #{classical_pre_forward.1} parent=0 // pred_check_branch
    %14 = sbr.rel (0) target = $region13
  $region12: #{classical_pre_forward.1} parent=0 // pred_region
    _
  $region13: #{classical_pre_forward.1} parent=0 // pred_fallthru
    _
  // Predicated region
  $region14: #{classical_pre_forward.1} parent=0 // pred_check
    _
  $region15: #{classical_pre_forward.1} parent=0 // pred_check_branch
    %16 = sbr.rel (0) target = $region17
  $region16: #{classical_pre_forward.1} parent=0 // pred_region
    _
  $region17: #{classical_pre_forward.1} parent=0 // pred_fallthru
    _
  %v17 = vld [vmem:[%s0] sm:$0x1]
  %v18 = vld [vmem:[%s2] sm:$0xff]
  %v19 = vld [vmem:[%s2 + $0x8] sm:$0xff]
  %v20 = vld [vmem:[%s2 + $0x10] sm:$0xff]
  %v21 = vld [vmem:[%s2 + $0x18] sm:$0xff]
  %v22 = vld [vmem:[%s2 + $0x20] sm:$0xff]
  %v23 = vld [vmem:[%s2 + $0x28] sm:$0xff]
  %v24 = vld [vmem:[%s2 + $0x30] sm:$0xff]
  %v25 = vld [vmem:[%s2 + $0x38] sm:$0xff]
  %v26 = vlaneseq
  %v27 = vshrl.u32 %v26, 7
  %v28 = vadd.s32 %v27, 8
  %v29 = vadd.s32 %v27, 16
  %v30 = vadd.s32 %v27, 24
  %v31 = vadd.s32 %v27, 32
  %v32 = vadd.s32 %v27, 40
  %v33 = vadd.s32 %v27, 48
  %v34 = vadd.s32 %v27, 56
  %v35 = vlaneseq
  %v36 = vshrl.u32 %v35, 7
  %v37 = vsub.s32 0, %v36
  %v38 = vrot.slane %v17, %v37
  %vm39 = vcmp.eq.s32.totalorder %v38, %v27
  %vm40 = vcmp.eq.s32.totalorder %v38, %v28
  %vm41 = vcmp.eq.s32.totalorder %v38, %v29
  %vm42 = vcmp.eq.s32.totalorder %v38, %v30
  %vm43 = vcmp.eq.s32.totalorder %v38, %v31
  %vm44 = vcmp.eq.s32.totalorder %v38, %v32
  %vm45 = vcmp.eq.s32.totalorder %v38, %v33
  %vm46 = vcmp.eq.s32.totalorder %v38, %v34
  %v47 = vsel %vm39, 1, 0
  %v48 = vsel %vm40, 1, 0
  %v49 = vsel %vm41, 1, 0
  %v50 = vsel %vm42, 1, 0
  %v51 = vsel %vm43, 1, 0
  %v52 = vsel %vm44, 1, 0
  %v53 = vsel %vm45, 1, 0
  %v54 = vsel %vm46, 1, 0
  %v55 = vcvt.s32.f32 %v47
  %v56 = vcvt.s32.f32 %v48
  %v57 = vcvt.s32.f32 %v49
  %v58 = vcvt.s32.f32 %v50
  %v59 = vcvt.s32.f32 %v51
  %v60 = vcvt.s32.f32 %v52
  %v61 = vcvt.s32.f32 %v53
  %v62 = vcvt.s32.f32 %v54
  %63 = vadd.xlane.f32.xlu0 %v55
  %v64 = vpop.xlane.xlu0 %63
  %65 = vadd.xlane.f32.xlu0 %v56
  %v66 = vpop.xlane.xlu0 %65
  %67 = vadd.xlane.f32.xlu0 %v57
  %v68 = vpop.xlane.xlu0 %67
  %69 = vadd.xlane.f32.xlu0 %v58
  %v70 = vpop.xlane.xlu0 %69
  %71 = vadd.xlane.f32.xlu0 %v59
  %v72 = vpop.xlane.xlu0 %71
  %73 = vadd.xlane.f32.xlu0 %v60
  %v74 = vpop.xlane.xlu0 %73
  %75 = vadd.xlane.f32.xlu0 %v61
  %v76 = vpop.xlane.xlu0 %75
  %77 = vadd.xlane.f32.xlu0 %v62
  %v78 = vpop.xlane.xlu0 %77
  %v79 = vmul.f32 %v18, %v64
  %v80 = vmul.f32 %v19, %v66
  %v81 = vmul.f32 %v20, %v68
  %v82 = vmul.f32 %v21, %v70
  %v83 = vmul.f32 %v22, %v72
  %v84 = vmul.f32 %v23, %v74
  %v85 = vmul.f32 %v24, %v76
  %v86 = vmul.f32 %v25, %v78
  %87 = vxpose.xlu0.b32.start [1/16] %v79, 128
  %88 = vxpose.xlu0.b32.cont [2/16] %v80, 128
  %89 = vxpose.xlu0.b32.cont [3/16] %v81, 128
  %90 = vxpose.xlu0.b32.cont [4/16] %v82, 128
  %91 = vxpose.xlu0.b32.cont [5/16] %v83, 128
  %92 = vxpose.xlu0.b32.cont [6/16] %v84, 128
  %93 = vxpose.xlu0.b32.cont [7/16] %v85, 128
  %94 = vxpose.xlu0.b32.cont [8/16] %v86, 128
  %95 = vxpose.xlu0.b32.cont [9/16] 0.0, 128
  %96 = vxpose.xlu0.b32.cont [10/16] 0.0, 128
  %97 = vxpose.xlu0.b32.cont [11/16] 0.0, 128
  %98 = vxpose.xlu0.b32.cont [12/16] 0.0, 128
  %99 = vxpose.xlu0.b32.cont [13/16] 0.0, 128
  %100 = vxpose.xlu0.b32.cont [14/16] 0.0, 128
  %101 = vxpose.xlu0.b32.cont [15/16] 0.0, 128
  %102 = vxpose.xlu0.b32.end [16/16] 0.0, 128
  %v103 = vpop.trf.xlu0
  %v104 = vpop.trf.xlu0
  %v105 = vpop.trf.xlu0
  %v106 = vpop.trf.xlu0
  %v107 = vpop.trf.xlu0
  %v108 = vpop.trf.xlu0
  %v109 = vpop.trf.xlu0
  %v110 = vpop.trf.xlu0
  %v111 = vpop.trf.xlu0
  %v112 = vpop.trf.xlu0
  %v113 = vpop.trf.xlu0
  %v114 = vpop.trf.xlu0
  %v115 = vpop.trf.xlu0
  %v116 = vpop.trf.xlu0
  %v117 = vpop.trf.xlu0
  %v118 = vpop.trf.xlu0
  %vm119 = vcmask 523264
  %v121 = vsel %vm119, %v103, 0
  %v124 = vsel %vm119, %v104, 0
  %126 = vmatprep.subr.mxu0 0.0
  %127 = vmatpush1.msra.mxu0 %v18
  %128 = vmatprep.subr.mxu0 0.0
  %129 = vmatpush1.msra.mxu0 %v19
  %130 = vmatprep.subr.mxu0 0.0
  %131 = vmatpush1.msra.mxu0 %v20
  %132 = vmatprep.subr.mxu0 0.0
  %133 = vmatpush1.msra.mxu0 %v21
  %134 = vmatprep.subr.mxu0 0.0
  %135 = vmatpush1.msra.mxu0 %v22
  %136 = vmatprep.subr.mxu0 0.0
  %137 = vmatpush1.msra.mxu0 %v23
  %138 = vmatprep.subr.mxu0 0.0
  %139 = vmatpush1.msra.mxu0 %v24
  %140 = vmatprep.subr.mxu0 0.0
  %141 = vmatpush1.msra.mxu0 %v25
  %142 = vmatprep.subr.mxu0 0.0
  %143 = vmatpush1.msra.mxu0 0.0
  %144 = vmatprep.subr.mxu0 0.0
  %145 = vmatpush1.msra.mxu0 0.0
  %146 = vmatprep.subr.mxu0 0.0
  %147 = vmatpush1.msra.mxu0 0.0
  %148 = vmatprep.subr.mxu0 0.0
  %149 = vmatpush1.msra.mxu0 0.0
  %150 = vmatprep.subr.mxu0 0.0
  %151 = vmatpush1.msra.mxu0 0.0
  %152 = vmatprep.subr.mxu0 0.0
  %153 = vmatpush1.msra.mxu0 0.0
  %154 = vmatprep.subr.mxu0 0.0
  %155 = vmatpush1.msra.mxu0 0.0
  %156 = vmatprep.subr.mxu0 0.0
  %157 = vmatpush1.msra.mxu0 0.0
  %158 = vmatprep.subr.mxu0 0.0
  %159 = vmatpush1.msra.mxu0 0.0
  %160 = vmatprep.subr.mxu0 0.0
  %161 = vmatpush1.msra.mxu0 0.0
  %162 = vmatprep.subr.mxu0 0.0
  %163 = vmatpush1.msra.mxu0 0.0
  %164 = vmatprep.subr.mxu0 0.0
  %165 = vmatpush1.msra.mxu0 0.0
  %166 = vmatprep.subr.mxu0 0.0
  %167 = vmatpush1.msra.mxu0 0.0
  %168 = vmatprep.subr.mxu0 0.0
  %169 = vmatpush1.msra.mxu0 0.0
  %170 = vmatprep.subr.mxu0 0.0
  %171 = vmatpush1.msra.mxu0 0.0
  %172 = vmatprep.subr.mxu0 0.0
  %173 = vmatpush1.msra.mxu0 0.0
  %174 = vmatprep.subr.mxu0 0.0
  %175 = vmatpush1.msra.mxu0 0.0
  %176 = vmatprep.subr.mxu0 0.0
  %177 = vmatpush1.msra.mxu0 0.0
  %178 = vmatprep.subr.mxu0 0.0
  %179 = vmatpush1.msra.mxu0 0.0
  %180 = vmatprep.subr.mxu0 0.0
  %181 = vmatpush1.msra.mxu0 0.0
  %182 = vmatprep.subr.mxu0 0.0
  %183 = vmatpush1.msra.mxu0 0.0
  %184 = vmatprep.subr.mxu0 0.0
  %185 = vmatpush1.msra.mxu0 0.0
  %186 = vmatprep.subr.mxu0 0.0
  %187 = vmatpush1.msra.mxu0 0.0
  %188 = vmatprep.subr.mxu0 0.0
  %189 = vmatpush1.msra.mxu0 0.0
  %190 = vmatprep.mubr.f32.mxu0 0.0
  %191 = vmatmul.mubr.f32.gmra.mrb[0].mxu0 %v121
  %v192 = vpop.f32.mrb[0].mxu0
  %v193 = vadd.f32 0.0, %v192
  %v194 = vpop.f32.mrb[0].mxu0
  %195 = vmatprep.mubr.f32.mxu0 0.0
  %196 = vmatmul.mubr.f32.gmra.mrb[0].mxu0 %v124
  %v197 = vpop.f32.mrb[0].mxu0
  %v198 = vadd.f32 0.0, %v197
  %v199 = vpop.f32.mrb[0].mxu0
  %200 = vdwg.mxu0
  %vm201 = vcmask 130048
  %202 = vst.msk [vmem:[%s4] sm:$0xff] %vm201, %v193
  %203 = vst.msk [vmem:[%s4 + $0x8] sm:$0xff] %vm201, %v198
  %v204 = vld [vmem:[%s1] sm:$0xf]
  %v205 = vld [vmem:[%s3] sm:$0xff]
  %v206 = vld [vmem:[%s3 + $0x8] sm:$0xff]
  %v207 = vld [vmem:[%s3 + $0x10] sm:$0xff]
  %v208 = vld [vmem:[%s3 + $0x18] sm:$0x1]
  %v209 = vlaneseq
  %v210 = vshrl.u32 %v209, 7
  %v211 = vsub.s32 0, %v210
  %v212 = vrot.slane %v204, %v211
  %v213 = vlaneseq
  %v214 = vshrl.u32 %v213, 7
  %v215 = vsub.s32 1, %v214
  %v216 = vrot.slane %v204, %v215
  %v217 = vlaneseq
  %v218 = vshrl.u32 %v217, 7
  %v219 = vsub.s32 2, %v218
  %v220 = vrot.slane %v204, %v219
  %v221 = vlaneseq
  %v222 = vshrl.u32 %v221, 7
  %v223 = vsub.s32 3, %v222
  %v224 = vrot.slane %v204, %v223
  %vm225 = vcmp.eq.s32.totalorder %v212, %v27
  %vm226 = vcmp.eq.s32.totalorder %v216, %v27
  %vm227 = vcmp.eq.s32.totalorder %v220, %v27
  %vm228 = vcmp.eq.s32.totalorder %v224, %v27
  %vm229 = vcmp.eq.s32.totalorder %v212, %v28
  %vm230 = vcmp.eq.s32.totalorder %v216, %v28
  %vm231 = vcmp.eq.s32.totalorder %v220, %v28
  %vm232 = vcmp.eq.s32.totalorder %v224, %v28
  %vm233 = vcmp.eq.s32.totalorder %v212, %v29
  %vm234 = vcmp.eq.s32.totalorder %v216, %v29
  %vm235 = vcmp.eq.s32.totalorder %v220, %v29
  %vm236 = vcmp.eq.s32.totalorder %v224, %v29
  %vm237 = vcmp.eq.s32.totalorder %v212, %v30
  %vm238 = vcmp.eq.s32.totalorder %v216, %v30
  %vm239 = vcmp.eq.s32.totalorder %v220, %v30
  %vm240 = vcmp.eq.s32.totalorder %v224, %v30
  %v241 = vsel %vm225, 1, 0
  %v242 = vsel %vm226, 1, 0
  %v243 = vsel %vm227, 1, 0
  %v244 = vsel %vm228, 1, 0
  %v245 = vsel %vm229, 1, 0
  %v246 = vsel %vm230, 1, 0
  %v247 = vsel %vm231, 1, 0
  %v248 = vsel %vm232, 1, 0
  %v249 = vsel %vm233, 1, 0
  %v250 = vsel %vm234, 1, 0
  %v251 = vsel %vm235, 1, 0
  %v252 = vsel %vm236, 1, 0
  %v253 = vsel %vm237, 1, 0
  %v254 = vsel %vm238, 1, 0
  %v255 = vsel %vm239, 1, 0
  %v256 = vsel %vm240, 1, 0
  %v257 = vcvt.s32.f32 %v241
  %v258 = vcvt.s32.f32 %v242
  %v259 = vcvt.s32.f32 %v243
  %v260 = vcvt.s32.f32 %v244
  %v261 = vcvt.s32.f32 %v245
  %v262 = vcvt.s32.f32 %v246
  %v263 = vcvt.s32.f32 %v247
  %v264 = vcvt.s32.f32 %v248
  %v265 = vcvt.s32.f32 %v249
  %v266 = vcvt.s32.f32 %v250
  %v267 = vcvt.s32.f32 %v251
  %v268 = vcvt.s32.f32 %v252
  %v269 = vcvt.s32.f32 %v253
  %v270 = vcvt.s32.f32 %v254
  %v271 = vcvt.s32.f32 %v255
  %v272 = vcvt.s32.f32 %v256
  %v273 = vadd.f32 %v257, %v258
  %v274 = vadd.f32 %v273, %v259
  %v275 = vadd.f32 %v274, %v260
  %276 = vadd.xlane.f32.xlu0 %v275
  %v277 = vpop.xlane.xlu0 %276
  %v278 = vadd.f32 %v261, %v262
  %v279 = vadd.f32 %v278, %v263
  %v280 = vadd.f32 %v279, %v264
  %281 = vadd.xlane.f32.xlu0 %v280
  %v282 = vpop.xlane.xlu0 %281
  %v283 = vadd.f32 %v265, %v266
  %v284 = vadd.f32 %v283, %v267
  %v285 = vadd.f32 %v284, %v268
  %286 = vadd.xlane.f32.xlu0 %v285
  %v287 = vpop.xlane.xlu0 %286
  %vm288 = vcmask 1040384
  %v289 = vsel %vm288, %v269, 0.0
  %v290 = vsel %vm288, %v270, 0.0
  %v291 = vadd.f32 %v289, %v290
  %v292 = vsel %vm288, %v271, 0.0
  %v293 = vadd.f32 %v291, %v292
  %v294 = vsel %vm288, %v272, 0.0
  %v295 = vadd.f32 %v293, %v294
  %296 = vadd.xlane.f32.xlu0 %v295
  %v297 = vpop.xlane.xlu0 %296
  %v298 = vmul.f32 %v205, %v277
  %v299 = vmul.f32 %v206, %v282
  %v300 = vmul.f32 %v207, %v287
  %v301 = vmul.f32 %v208, %v297
  %302 = vxpose.xlu0.b32.start [1/16] %v298, 128
  %303 = vxpose.xlu0.b32.cont [2/16] %v299, 128
  %304 = vxpose.xlu0.b32.cont [3/16] %v300, 128
  %305 = vxpose.xlu0.b32.cont [4/16] %v301, 128
  %306 = vxpose.xlu0.b32.cont [5/16] 0.0, 128
  %307 = vxpose.xlu0.b32.cont [6/16] 0.0, 128
  %308 = vxpose.xlu0.b32.cont [7/16] 0.0, 128
  %309 = vxpose.xlu0.b32.cont [8/16] 0.0, 128
  %310 = vxpose.xlu0.b32.cont [9/16] 0.0, 128
  %311 = vxpose.xlu0.b32.cont [10/16] 0.0, 128
  %312 = vxpose.xlu0.b32.cont [11/16] 0.0, 128
  %313 = vxpose.xlu0.b32.cont [12/16] 0.0, 128
  %314 = vxpose.xlu0.b32.cont [13/16] 0.0, 128
  %315 = vxpose.xlu0.b32.cont [14/16] 0.0, 128
  %316 = vxpose.xlu0.b32.cont [15/16] 0.0, 128
  %317 = vxpose.xlu0.b32.end [16/16] 0.0, 128
  %v318 = vpop.trf.xlu0
  %v319 = vpop.trf.xlu0
  %v320 = vpop.trf.xlu0
  %v321 = vpop.trf.xlu0
  %v322 = vpop.trf.xlu0
  %v323 = vpop.trf.xlu0
  %v324 = vpop.trf.xlu0
  %v325 = vpop.trf.xlu0
  %v326 = vpop.trf.xlu0
  %v327 = vpop.trf.xlu0
  %v328 = vpop.trf.xlu0
  %v329 = vpop.trf.xlu0
  %v330 = vpop.trf.xlu0
  %v331 = vpop.trf.xlu0
  %v332 = vpop.trf.xlu0
  %v333 = vpop.trf.xlu0
  %vm334 = vcmask 203776
  %v336 = vsel %vm334, %v318, 0
  %v339 = vsel %vm334, %v319, 0
  %v342 = vsel %vm288, %v208, 0
  %344 = vmatprep.subr.mxu0 0.0
  %345 = vmatpush1.msra.mxu0 %v205
  %346 = vmatprep.subr.mxu0 0.0
  %347 = vmatpush1.msra.mxu0 %v206
  %348 = vmatprep.subr.mxu0 0.0
  %349 = vmatpush1.msra.mxu0 %v207
  %350 = vmatprep.subr.mxu0 0.0
  %351 = vmatpush1.msra.mxu0 %v342
  %352 = vmatprep.subr.mxu0 0.0
  %353 = vmatpush1.msra.mxu0 0.0
  %354 = vmatprep.subr.mxu0 0.0
  %355 = vmatpush1.msra.mxu0 0.0
  %356 = vmatprep.subr.mxu0 0.0
  %357 = vmatpush1.msra.mxu0 0.0
  %358 = vmatprep.subr.mxu0 0.0
  %359 = vmatpush1.msra.mxu0 0.0
  %360 = vmatprep.subr.mxu0 0.0
  %361 = vmatpush1.msra.mxu0 0.0
  %362 = vmatprep.subr.mxu0 0.0
  %363 = vmatpush1.msra.mxu0 0.0
  %364 = vmatprep.subr.mxu0 0.0
  %365 = vmatpush1.msra.mxu0 0.0
  %366 = vmatprep.subr.mxu0 0.0
  %367 = vmatpush1.msra.mxu0 0.0
  %368 = vmatprep.subr.mxu0 0.0
  %369 = vmatpush1.msra.mxu0 0.0
  %370 = vmatprep.subr.mxu0 0.0
  %371 = vmatpush1.msra.mxu0 0.0
  %372 = vmatprep.subr.mxu0 0.0
  %373 = vmatpush1.msra.mxu0 0.0
  %374 = vmatprep.subr.mxu0 0.0
  %375 = vmatpush1.msra.mxu0 0.0
  %376 = vmatprep.subr.mxu0 0.0
  %377 = vmatpush1.msra.mxu0 0.0
  %378 = vmatprep.subr.mxu0 0.0
  %379 = vmatpush1.msra.mxu0 0.0
  %380 = vmatprep.subr.mxu0 0.0
  %381 = vmatpush1.msra.mxu0 0.0
  %382 = vmatprep.subr.mxu0 0.0
  %383 = vmatpush1.msra.mxu0 0.0
  %384 = vmatprep.subr.mxu0 0.0
  %385 = vmatpush1.msra.mxu0 0.0
  %386 = vmatprep.subr.mxu0 0.0
  %387 = vmatpush1.msra.mxu0 0.0
  %388 = vmatprep.subr.mxu0 0.0
  %389 = vmatpush1.msra.mxu0 0.0
  %390 = vmatprep.subr.mxu0 0.0
  %391 = vmatpush1.msra.mxu0 0.0
  %392 = vmatprep.subr.mxu0 0.0
  %393 = vmatpush1.msra.mxu0 0.0
  %394 = vmatprep.subr.mxu0 0.0
  %395 = vmatpush1.msra.mxu0 0.0
  %396 = vmatprep.subr.mxu0 0.0
  %397 = vmatpush1.msra.mxu0 0.0
  %398 = vmatprep.subr.mxu0 0.0
  %399 = vmatpush1.msra.mxu0 0.0
  %400 = vmatprep.subr.mxu0 0.0
  %401 = vmatpush1.msra.mxu0 0.0
  %402 = vmatprep.subr.mxu0 0.0
  %403 = vmatpush1.msra.mxu0 0.0
  %404 = vmatprep.subr.mxu0 0.0
  %405 = vmatpush1.msra.mxu0 0.0
  %406 = vmatprep.subr.mxu0 0.0
  %407 = vmatpush1.msra.mxu0 0.0
  %408 = vmatprep.mubr.f32.mxu0 0.0
  %409 = vmatmul.mubr.f32.gmra.mrb[0].mxu0 %v336
  %v410 = vpop.f32.mrb[0].mxu0
  %v411 = vadd.f32 0.0, %v410
  %v412 = vpop.f32.mrb[0].mxu0
  %413 = vmatprep.mubr.f32.mxu0 0.0
  %414 = vmatmul.mubr.f32.gmra.mrb[0].mxu0 %v339
  %v415 = vpop.f32.mrb[0].mxu0
  %v416 = vadd.f32 0.0, %v415
  %v417 = vpop.f32.mrb[0].mxu0
  %418 = vdwg.mxu0
  %s419 = scalar_lea.vmem %s4, 16
  %420 = vst.msk [vmem:[%s419] sm:$0xff] %vm201, %v411
  %421 = vst.msk [vmem:[%s419 + $0x8] sm:$0xff] %vm201, %v416
  // Predicated region
  $region18: #{classical_pre_forward.1} parent=0 // pred_check
    _
  $region19: #{classical_pre_forward.1} parent=0 // pred_check_branch
    %423 = sbr.rel (0) target = $region21
  $region20: #{classical_pre_forward.1} parent=0 // pred_region
    _
  $region21: #{classical_pre_forward.1} parent=0 // pred_fallthru
    _
  // Predicated region
  $region22: #{classical_pre_forward.1} parent=0 // pred_check
    _
  $region23: #{classical_pre_forward.1} parent=0 // pred_check_branch
    %425 = sbr.rel (0) target = $region25
  $region24: #{classical_pre_forward.1} parent=0 // pred_region
    _
  $region25: #{classical_pre_forward.1} parent=0 // pred_fallthru
    _

</llo_original>
